<compile_context>
chip_gen: v7x
topology: tpu7x:2x2x1
jax: 0.10.0
libtpu: 0.0.40
codegen_flags: <defaults>
</compile_context>

<pallas_src>
import jax
import jax.numpy as jnp
from jax.experimental import pallas as pl
from jax.experimental.pallas import tpu as pltpu


def moe_head_kernel(emb_a_ref, emb_b_ref, w_ref, bg_ref, bc_ref,
                    logits_ref, combined_ref):
    a = emb_a_ref[...]                       # (TB, H1)
    b = emb_b_ref[...]                       # (TB, H2)
    tb, h1 = a.shape
    d = combined_ref.shape[1]                # H1 + H2
    dg = bg_ref.shape[1]                     # gate width = D // 2
    c = bc_ref.shape[1]                      # num classes = 2

    # Stage the 64-lane concat of (a, b) through the output VMEM block (pure
    # VMEM store/load, no HBM traffic) so one MXU dot covers gate + classifier.
    combined_ref[:, :h1] = a
    combined_ref[:, h1:] = b
    cat = combined_ref[...]                  # (TB, D) == cat(a, b)

    # Fused gate+classifier matmul against the zero-padded merged weight:
    #   p[:, :dg]          = cat(a, b) @ Wg
    #   p[:, dg:dg+c]      = a @ Wc_top      (b rows zero-padded)
    #   p[:, dg+c:dg+2c]   = b @ Wc_bot      (a rows zero-padded)
    p = jnp.dot(cat, w_ref[...], preferred_element_type=jnp.float32)

    # --- LinearGateNetwork: softmax over dim=1, only lanes 0/1 consumed ---
    proj = p[:, :dg] + bg_ref[...]           # (TB, Dg)
    m = jnp.max(proj, axis=1, keepdims=True)
    e = jnp.exp(proj - m)
    denom = jnp.sum(e, axis=1, keepdims=True)        # (TB, 1)
    # approx=False keeps the 1e-5 numerical match with the f32 reference.
    inv = pl.reciprocal(denom, approx=False)
    w_a = e[:, 0:1] * inv                    # (TB, 1)
    w_b = e[:, 1:2] * inv                    # (TB, 1)

    # --- combined = cat(a * w_a, b * w_b): one full-width lane-selected store
    lane = jax.lax.broadcasted_iota(jnp.int32, (tb, d), 1)
    combined_ref[...] = cat * jnp.where(lane < h1, w_a, w_b)

    # --- classifier: (a*w_a)@Wc_top + (b*w_b)@Wc_bot + bc (exact algebra) ---
    logits_ref[...] = (w_a * p[:, dg:dg + c]
                       + w_b * p[:, dg + c:dg + 2 * c]
                       + bc_ref[...])


def _merge_weights(wg, wc, h1):
    """Fuse gate + classifier weights into one (D, Dg + 2*C) matrix.

    Columns [:Dg] = gate weight; columns [Dg:Dg+C] = classifier rows for the
    first expert (other rows zero); columns [Dg+C:] = classifier rows for the
    second expert (other rows zero).
    """
    D, _ = wg.shape
    C = wc.shape[1]
    wc_top = jnp.concatenate([wc[:h1], jnp.zeros((D - h1, C), wc.dtype)], axis=0)
    wc_bot = jnp.concatenate([jnp.zeros((h1, C), wc.dtype), wc[h1:]], axis=0)
    return jnp.concatenate([wg, wc_top, wc_bot], axis=1)


def _pick_tile(batch, max_block_rows):
    """Batch tile: multiple of 8 (or full batch), >= 2 grid steps when B > 8
    so ("parallel",) can shard across both v7x TensorCores."""
    if batch <= 8:
        return batch
    half = -(-batch // 2)                    # cdiv(batch, 2)
    tb = ((half + 7) // 8) * 8
    return min(tb, max_block_rows)


def moe_forward(emb_a, emb_b, wg, bg, wc, bc, *, max_block_rows=2048):
    B, H1 = emb_a.shape
    _, H2 = emb_b.shape
    D = H1 + H2
    Dg = wg.shape[1]                         # gate projection width = D // 2
    C = wc.shape[1]                          # number of classes = 2

    w_full = _merge_weights(wg, wc, H1)      # (D, Dg + 2C), tiny, VMEM-resident

    tb = _pick_tile(B, max_block_rows)
    grid = (pl.cdiv(B, tb),)

    out_shape = (jax.ShapeDtypeStruct((B, C), jnp.float32),   # logits
                 jax.ShapeDtypeStruct((B, D), jnp.float32))   # combined embedding

    return pl.pallas_call(
        moe_head_kernel,
        out_shape=out_shape,
        grid=grid,
        in_specs=[
            pl.BlockSpec((tb, H1), lambda i: (i, 0)),          # emb_a tile
            pl.BlockSpec((tb, H2), lambda i: (i, 0)),          # emb_b tile
            pl.BlockSpec((D, Dg + 2 * C), lambda i: (0, 0)),   # merged weight (VMEM-resident)
            pl.BlockSpec((1, Dg), lambda i: (0, 0)),           # gate bias
            pl.BlockSpec((1, C), lambda i: (0, 0)),            # classifier bias
        ],
        out_specs=(
            pl.BlockSpec((tb, C), lambda i: (i, 0)),
            pl.BlockSpec((tb, D), lambda i: (i, 0)),
        ),
        compiler_params=pltpu.CompilerParams(
            dimension_semantics=("parallel",)),
    )(emb_a, emb_b, w_full, bg, bc)


def _linear_init(key, in_dim, out_dim):
    """Deterministic PyTorch-style nn.Linear init, weight stored (in_dim, out_dim)."""
    kw, kb = jax.random.split(key)
    bound = 1.0 / jnp.sqrt(in_dim)
    w = jax.random.uniform(kw, (in_dim, out_dim), jnp.float32, -bound, bound)
    b = jax.random.uniform(kb, (1, out_dim), jnp.float32, -bound, bound)
    return w, b


def reference_forward(emb_a, emb_b, wg, bg, wc, bc):
    combined_feats = jnp.concatenate([emb_a, emb_b], axis=1)
    weights = jax.nn.softmax(combined_feats @ wg + bg, axis=1)
    w_a, w_b = weights[:, 0:1], weights[:, 1:2]
    combined = jnp.concatenate([emb_a * w_a, emb_b * w_b], axis=1)
    logits = combined @ wc + bc
    return logits, combined


if __name__ == "__main__":
    hidden1 = 32     # base_model1.transformer_model.config.hidden_size
    hidden2 = 32     # base_model2.transformer_model.config.hidden_size
    combined_dim = hidden1 + hidden2

    key = jax.random.PRNGKey(0)
    k_a, k_b, k_gate, k_cls = jax.random.split(key, 4)

    # gate_network.projection: Linear(combined_dim, combined_dim // 2)
    wg, bg = _linear_init(k_gate, combined_dim, combined_dim // 2)
    # classifier: Linear(combined_dim, 2)
    wc, bc = _linear_init(k_cls, combined_dim, 2)

    ok = True
    # batch=8 exercises the single-tile path; batch=20 exercises the
    # multi-step grid (2 steps) with a padded tail tile.
    for batch in (8, 20):
        ka = jax.random.fold_in(k_a, batch)
        kb = jax.random.fold_in(k_b, batch)
        emb_a = jax.random.normal(ka, (batch, hidden1), jnp.float32)
        emb_b = jax.random.normal(kb, (batch, hidden2), jnp.float32)

        logits, combined = moe_forward(emb_a, emb_b, wg, bg, wc, bc)
        jax.block_until_ready((logits, combined))

        ref_logits, ref_combined = reference_forward(emb_a, emb_b, wg, bg, wc, bc)
        ok &= bool(jnp.allclose(logits, ref_logits, atol=1e-5, rtol=1e-5))
        ok &= bool(jnp.allclose(combined, ref_combined, atol=1e-5, rtol=1e-5))

    assert ok, "Pallas MoE head does not match the JAX reference"
    print("KERNEL_OK")
</pallas_src>

<mosaic_0001>
module attributes {stable_mosaic.version = 11 : i64} {
  func.func @moe_head_kernel(%arg0: i32, %arg1: memref<8x32xf32, #tpu.memory_space<vmem>>, %arg2: memref<8x32xf32, #tpu.memory_space<vmem>>, %arg3: memref<64x36xf32, #tpu.memory_space<vmem>>, %arg4: memref<1x32xf32, #tpu.memory_space<vmem>>, %arg5: memref<1x2xf32, #tpu.memory_space<vmem>>, %arg6: memref<8x2xf32, #tpu.memory_space<vmem>>, %arg7: memref<8x64xf32, #tpu.memory_space<vmem>>) attributes {dimension_semantics = [#tpu.dimension_semantics<parallel>], iteration_bounds = array<i64: 1>, scalar_prefetch = 0 : i64, scratch_operands = 0 : i64, tpu.core_type = #tpu.core_type<tc>, window_params = [{transform_indices = @transform_0, window_bounds = array<i64: 8, 32>}, {transform_indices = @transform_1, window_bounds = array<i64: 8, 32>}, {pipeline_mode = #tpu.pipeline_mode<synchronous>, transform_indices = @transform_2, window_bounds = array<i64: 64, 36>}, {pipeline_mode = #tpu.pipeline_mode<synchronous>, transform_indices = @transform_3, window_bounds = array<i64: 1, 32>}, {pipeline_mode = #tpu.pipeline_mode<synchronous>, transform_indices = @transform_4, window_bounds = array<i64: 1, 2>}, {transform_indices = @transform_5, window_bounds = array<i64: 8, 2>}, {transform_indices = @transform_6, window_bounds = array<i64: 8, 64>}]} {
    %c0 = arith.constant 0 : index
    %c0_0 = arith.constant 0 : index
    %0 = vector.load %arg1[%c0, %c0_0] : memref<8x32xf32, #tpu.memory_space<vmem>>, vector<8x32xf32>
    %c0_1 = arith.constant 0 : index
    %c0_2 = arith.constant 0 : index
    %1 = vector.load %arg2[%c0_1, %c0_2] : memref<8x32xf32, #tpu.memory_space<vmem>>, vector<8x32xf32>
    %c0_3 = arith.constant 0 : index
    %c0_4 = arith.constant 0 : index
    %2 = vector.load %arg7[%c0_3, %c0_4] : memref<8x64xf32, #tpu.memory_space<vmem>>, vector<8x32xf32>
    tpu.vector_store %arg7[%c0_3, %c0_4], %0 {strides = array<i32>} : memref<8x64xf32, #tpu.memory_space<vmem>>, vector<8x32xf32>,
    %c0_5 = arith.constant 0 : index
    %c32 = arith.constant 32 : index
    %3 = vector.load %arg7[%c0_5, %c32] : memref<8x64xf32, #tpu.memory_space<vmem>>, vector<8x32xf32>
    tpu.vector_store %arg7[%c0_5, %c32], %1 {strides = array<i32>} : memref<8x64xf32, #tpu.memory_space<vmem>>, vector<8x32xf32>,
    %c0_6 = arith.constant 0 : index
    %c0_7 = arith.constant 0 : index
    %4 = vector.load %arg7[%c0_6, %c0_7] : memref<8x64xf32, #tpu.memory_space<vmem>>, vector<8x64xf32>
    %c0_8 = arith.constant 0 : index
    %c0_9 = arith.constant 0 : index
    %5 = vector.load %arg3[%c0_8, %c0_9] : memref<64x36xf32, #tpu.memory_space<vmem>>, vector<64x36xf32>
    %cst = arith.constant dense<0.000000e+00> : vector<8x36xf32>
    %6 = tpu.matmul %4, %5, %cst {dimension_numbers = #tpu.dot_dimension_numbers<[1], [0], [0], [1], [0, 0, 1, 1], [], []>} : vector<8x64xf32>, vector<64x36xf32>, vector<8x36xf32> -> vector<8x36xf32>
    %7 = vector.extract_strided_slice %6 {offsets = [0, 0], sizes = [8, 32], strides = [1, 1]} : vector<8x36xf32> to vector<8x32xf32>
    %c0_10 = arith.constant 0 : index
    %c0_11 = arith.constant 0 : index
    %8 = vector.load %arg4[%c0_10, %c0_11] : memref<1x32xf32, #tpu.memory_space<vmem>>, vector<1x32xf32>
    %9 = vector.broadcast %8 : vector<1x32xf32> to vector<8x32xf32>
    %10 = arith.addf %7, %9 : vector<8x32xf32>
    %cst_12 = arith.constant dense<0xFF800000> : vector<8xf32>
    %11 = vector.multi_reduction <maximumf>, %10, %cst_12 [1] : vector<8x32xf32> to vector<8xf32>
    %12 = vector.shape_cast %11 : vector<8xf32> to vector<8x1xf32>
    %13 = vector.broadcast %12 : vector<8x1xf32> to vector<8x32xf32>
    %14 = arith.subf %10, %13 : vector<8x32xf32>
    %15 = math.exp %14 : vector<8x32xf32>
    %cst_13 = arith.constant dense<0.000000e+00> : vector<8xf32>
    %16 = vector.multi_reduction <add>, %15, %cst_13 [1] : vector<8x32xf32> to vector<8xf32>
    %17 = vector.shape_cast %16 : vector<8xf32> to vector<8x1xf32>
    %18 = tpu.reciprocal %17 : vector<8x1xf32> -> vector<8x1xf32>
    %19 = vector.extract_strided_slice %15 {offsets = [0, 0], sizes = [8, 1], strides = [1, 1]} : vector<8x32xf32> to vector<8x1xf32>
    %20 = arith.mulf %19, %18 : vector<8x1xf32>
    %21 = vector.extract_strided_slice %15 {offsets = [0, 1], sizes = [8, 1], strides = [1, 1]} : vector<8x32xf32> to vector<8x1xf32>
    %22 = arith.mulf %21, %18 : vector<8x1xf32>
    %23 = tpu.iota {dimensions = array<i32: 1>} : vector<8x64xi32>
    %c32_i32 = arith.constant 32 : i32
    %24 = vector.broadcast %c32_i32 : i32 to vector<8x64xi32>
    %25 = arith.cmpi slt, %23, %24 : vector<8x64xi32>
    %26 = vector.shape_cast %20 : vector<8x1xf32> to vector<8x1xf32>
    %27 = vector.broadcast %26 : vector<8x1xf32> to vector<8x64xf32>
    %28 = vector.shape_cast %22 : vector<8x1xf32> to vector<8x1xf32>
    %29 = vector.broadcast %28 : vector<8x1xf32> to vector<8x64xf32>
    %30 = arith.select %25, %27, %29 : vector<8x64xi1>, vector<8x64xf32>
    %31 = arith.mulf %4, %30 : vector<8x64xf32>
    %c0_14 = arith.constant 0 : index
    %c0_15 = arith.constant 0 : index
    %32 = vector.load %arg7[%c0_14, %c0_15] : memref<8x64xf32, #tpu.memory_space<vmem>>, vector<8x64xf32>
    tpu.vector_store %arg7[%c0_14, %c0_15], %31 {strides = array<i32>} : memref<8x64xf32, #tpu.memory_space<vmem>>, vector<8x64xf32>,
    %33 = vector.extract_strided_slice %6 {offsets = [0, 32], sizes = [8, 2], strides = [1, 1]} : vector<8x36xf32> to vector<8x2xf32>
    %34 = vector.broadcast %20 : vector<8x1xf32> to vector<8x2xf32>
    %35 = arith.mulf %34, %33 : vector<8x2xf32>
    %36 = vector.extract_strided_slice %6 {offsets = [0, 34], sizes = [8, 2], strides = [1, 1]} : vector<8x36xf32> to vector<8x2xf32>
    %37 = vector.broadcast %22 : vector<8x1xf32> to vector<8x2xf32>
    %38 = arith.mulf %37, %36 : vector<8x2xf32>
    %39 = arith.addf %35, %38 : vector<8x2xf32>
    %c0_16 = arith.constant 0 : index
    %c0_17 = arith.constant 0 : index
    %40 = vector.load %arg5[%c0_16, %c0_17] : memref<1x2xf32, #tpu.memory_space<vmem>>, vector<1x2xf32>
    %41 = vector.broadcast %40 : vector<1x2xf32> to vector<8x2xf32>
    %42 = arith.addf %39, %41 : vector<8x2xf32>
    %c0_18 = arith.constant 0 : index
    %c0_19 = arith.constant 0 : index
    %43 = vector.load %arg6[%c0_18, %c0_19] : memref<8x2xf32, #tpu.memory_space<vmem>>, vector<8x2xf32>
    tpu.vector_store %arg6[%c0_18, %c0_19], %42 {strides = array<i32>} : memref<8x2xf32, #tpu.memory_space<vmem>>, vector<8x2xf32>,
    return
  }
  func.func @transform_0(%arg0: i32) -> (i32, i32) {
    %c0_i32 = arith.constant 0 : i32
    %c0_i32_0 = arith.constant 0 : i32
    return %arg0, %c0_i32 : i32, i32
  }
  func.func @transform_1(%arg0: i32) -> (i32, i32) {
    %c0_i32 = arith.constant 0 : i32
    %c0_i32_0 = arith.constant 0 : i32
    return %arg0, %c0_i32 : i32, i32
  }
  func.func @transform_2(%arg0: i32) -> (i32, i32) {
    %c0_i32 = arith.constant 0 : i32
    %c0_i32_0 = arith.constant 0 : i32
    %c0_i32_1 = arith.constant 0 : i32
    return %c0_i32, %c0_i32_0 : i32, i32
  }
  func.func @transform_3(%arg0: i32) -> (i32, i32) {
    %c0_i32 = arith.constant 0 : i32
    %c0_i32_0 = arith.constant 0 : i32
    %c0_i32_1 = arith.constant 0 : i32
    return %c0_i32, %c0_i32_0 : i32, i32
  }
  func.func @transform_4(%arg0: i32) -> (i32, i32) {
    %c0_i32 = arith.constant 0 : i32
    %c0_i32_0 = arith.constant 0 : i32
    %c0_i32_1 = arith.constant 0 : i32
    return %c0_i32, %c0_i32_0 : i32, i32
  }
  func.func @transform_5(%arg0: i32) -> (i32, i32) {
    %c0_i32 = arith.constant 0 : i32
    %c0_i32_0 = arith.constant 0 : i32
    return %arg0, %c0_i32 : i32, i32
  }
  func.func @transform_6(%arg0: i32) -> (i32, i32) {
    %c0_i32 = arith.constant 0 : i32
    %c0_i32_0 = arith.constant 0 : i32
    return %arg0, %c0_i32 : i32, i32
  }
}

</mosaic_0001>

<llo_original>
// kernel: tpu_custom_call.1
$region0: #{tpu_custom_call.1}
  #allocation0 [shape = 'u32[]', space=smem, size = 0x4, offset = 0x4, fixed_abs, tag = 'smem constant byte address 0x4 - core index']
  #allocation1 [shape = 'u32[144,128]{1,0:T(1,128)}', space=vmem, size = 0x12000, scoped, tag = 'internal scratch']
  %s0 = inlined_call_operand.vmem [shape: f32[8,32], index: 0, kind: input, shape index: {}]
  %s1 = inlined_call_operand.vmem [shape: f32[8,32], index: 1, kind: input, shape index: {}]
  %s2 = inlined_call_operand.vmem [shape: f32[64,36], index: 2, kind: input, shape index: {}]
  %s3 = inlined_call_operand.vmem [shape: f32[1,32], index: 3, kind: input, shape index: {}]
  %s4 = inlined_call_operand.vmem [shape: f32[1,2], index: 4, kind: input, shape index: {}]
  %s5 = inlined_call_operand.vmem [shape: f32[8,2], index: 5, kind: output, shape index: {0}]
  %s6 = inlined_call_operand.hbm [shape: f32[8,64], index: 6, kind: output, shape index: {1}]
  %7 = xla_tuple %s5, %s6
  %s8 = sld [smem:[#allocation0]]
  $region38: #{tpu_custom_call.1} parent=0
    _
  %s10 = ssub.s32 1, %s8
  %s11 = scalar_select 0, %s10, %s8
  $region1: #{tpu_custom_call.1} parent=0
    #allocation2 [shape = 'u8[4096]{0}', space=vmem, size = 0x1000, scoped, tag = 'output window, operand 1, single buffered']
    #allocation3 [shape = 's32[1]{0}', space=sflag, size = 0x4, scoped, tag = 'scoped memory for tpu_custom_call.1']
    %12 = vsyncpa [#allocation3], 0
    // Predicated region
    $region2: #{tpu_custom_call.1} parent=1 // pred_check
      _
    $region3: #{tpu_custom_call.1} parent=1 // pred_check_branch
      %14 = sbr.rel (0) target = $region5
    $region4: #{tpu_custom_call.1} parent=1 // pred_region
      _
    $region5: #{tpu_custom_call.1} parent=1 // pred_fallthru
      _
    // Predicated region
    $region6: #{tpu_custom_call.1} parent=1 // pred_check
      _
    $region7: #{tpu_custom_call.1} parent=1 // pred_check_branch
      %16 = sbr.rel (0) target = $region9
    $region8: #{tpu_custom_call.1} parent=1 // pred_region
      _
    $region9: #{tpu_custom_call.1} parent=1 // pred_fallthru
      _
    // Predicated region
    $region10: #{tpu_custom_call.1} parent=1 // pred_check
      _
    $region11: #{tpu_custom_call.1} parent=1 // pred_check_branch
      %18 = sbr.rel (0) target = $region13
    $region12: #{tpu_custom_call.1} parent=1 // pred_region
      _
    $region13: #{tpu_custom_call.1} parent=1 // pred_fallthru
      _
    // Predicated region
    $region14: #{tpu_custom_call.1} parent=1 // pred_check
      _
    $region15: #{tpu_custom_call.1} parent=1 // pred_check_branch
      %20 = sbr.rel (0) target = $region17
    $region16: #{tpu_custom_call.1} parent=1 // pred_region
      _
    $region17: #{tpu_custom_call.1} parent=1 // pred_fallthru
      _
    // Predicated region
    $region18: #{tpu_custom_call.1} parent=1 // pred_check
      _
    $region19: #{tpu_custom_call.1} parent=1 // pred_check_branch
      %22 = sbr.rel (0) target = $region21
    $region20: #{tpu_custom_call.1} parent=1 // pred_region
      _
    $region21: #{tpu_custom_call.1} parent=1 // pred_fallthru
      _
    %v23 = vld [vmem:[%s0] sm:$0xff]
    %v24 = vld [vmem:[%s1] sm:$0xff]
    %vm25 = vcmask 261120
    %26 = vst.msk [vmem:[#allocation2] sm:$0xff] %vm25, %v23
    %28 = vrot.lane.b32.xlu0 %v24, 32
    %v29 = vpop.permute.xlu0 %28
    %vm31 = vcmask 523520
    %32 = vst.msk [vmem:[#allocation2] sm:$0xff] %vm31, %v29
    %v33 = vld [vmem:[#allocation2] sm:$0xff]
    %v34 = vld [vmem:[%s2] sm:$0xff]
    %v35 = vld [vmem:[%s2 + $0x8] sm:$0xff]
    %v36 = vld [vmem:[%s2 + $0x10] sm:$0xff]
    %v37 = vld [vmem:[%s2 + $0x18] sm:$0xff]
    %v38 = vld [vmem:[%s2 + $0x20] sm:$0xff]
    %v39 = vld [vmem:[%s2 + $0x28] sm:$0xff]
    %v40 = vld [vmem:[%s2 + $0x30] sm:$0xff]
    %v41 = vld [vmem:[%s2 + $0x38] sm:$0xff]
    %vm42 = vcmask 523264
    %v44 = vsel %vm42, %v33, 0
    %46 = vmatprep.subr.mxu0 0.0
    %47 = vmatpush1.msra.mxu0 %v34
    %48 = vmatprep.subr.mxu0 0.0
    %49 = vmatpush1.msra.mxu0 %v35
    %50 = vmatprep.subr.mxu0 0.0
    %51 = vmatpush1.msra.mxu0 %v36
    %52 = vmatprep.subr.mxu0 0.0
    %53 = vmatpush1.msra.mxu0 %v37
    %54 = vmatprep.subr.mxu0 0.0
    %55 = vmatpush1.msra.mxu0 %v38
    %56 = vmatprep.subr.mxu0 0.0
    %57 = vmatpush1.msra.mxu0 %v39
    %58 = vmatprep.subr.mxu0 0.0
    %59 = vmatpush1.msra.mxu0 %v40
    %60 = vmatprep.subr.mxu0 0.0
    %61 = vmatpush1.msra.mxu0 %v41
    %62 = vmatprep.subr.mxu0 0.0
    %63 = vmatpush1.msra.mxu0 0.0
    %64 = vmatprep.subr.mxu0 0.0
    %65 = vmatpush1.msra.mxu0 0.0
    %66 = vmatprep.subr.mxu0 0.0
    %67 = vmatpush1.msra.mxu0 0.0
    %68 = vmatprep.subr.mxu0 0.0
    %69 = vmatpush1.msra.mxu0 0.0
    %70 = vmatprep.subr.mxu0 0.0
    %71 = vmatpush1.msra.mxu0 0.0
    %72 = vmatprep.subr.mxu0 0.0
    %73 = vmatpush1.msra.mxu0 0.0
    %74 = vmatprep.subr.mxu0 0.0
    %75 = vmatpush1.msra.mxu0 0.0
    %76 = vmatprep.subr.mxu0 0.0
    %77 = vmatpush1.msra.mxu0 0.0
    %78 = vmatprep.subr.mxu0 0.0
    %79 = vmatpush1.msra.mxu0 0.0
    %80 = vmatprep.subr.mxu0 0.0
    %81 = vmatpush1.msra.mxu0 0.0
    %82 = vmatprep.subr.mxu0 0.0
    %83 = vmatpush1.msra.mxu0 0.0
    %84 = vmatprep.subr.mxu0 0.0
    %85 = vmatpush1.msra.mxu0 0.0
    %86 = vmatprep.subr.mxu0 0.0
    %87 = vmatpush1.msra.mxu0 0.0
    %88 = vmatprep.subr.mxu0 0.0
    %89 = vmatpush1.msra.mxu0 0.0
    %90 = vmatprep.subr.mxu0 0.0
    %91 = vmatpush1.msra.mxu0 0.0
    %92 = vmatprep.subr.mxu0 0.0
    %93 = vmatpush1.msra.mxu0 0.0
    %94 = vmatprep.subr.mxu0 0.0
    %95 = vmatpush1.msra.mxu0 0.0
    %96 = vmatprep.subr.mxu0 0.0
    %97 = vmatpush1.msra.mxu0 0.0
    %98 = vmatprep.subr.mxu0 0.0
    %99 = vmatpush1.msra.mxu0 0.0
    %100 = vmatprep.subr.mxu0 0.0
    %101 = vmatpush1.msra.mxu0 0.0
    %102 = vmatprep.subr.mxu0 0.0
    %103 = vmatpush1.msra.mxu0 0.0
    %104 = vmatprep.subr.mxu0 0.0
    %105 = vmatpush1.msra.mxu0 0.0
    %106 = vmatprep.subr.mxu0 0.0
    %107 = vmatpush1.msra.mxu0 0.0
    %108 = vmatprep.subr.mxu0 0.0
    %109 = vmatpush1.msra.mxu0 0.0
    %110 = vmatprep.mubr.f32.mxu0 0.0
    %111 = vmatmul.mubr.f32.gmra.mrb[0].mxu0 %v44
    %v112 = vpop.f32.mrb[0].mxu0
    %v113 = vadd.f32 0.0, %v112
    %v114 = vpop.f32.mrb[0].mxu0
    %115 = vdwg.mxu0
    %v116 = vld [vmem:[%s3] sm:$0x1]
    %v118 = vlaneseq
    %v119 = vshrl.u32 %v118, 7
    %v120 = vsub.s32 0, %v119
    %v121 = vrot.slane %v116, %v120
    %v123 = vadd.f32 %v113, %v121
    %v124 = vsel %vm25, %v123, -inf
    %125 = vmax.xlane.f32.xlu0 %v124
    %v126 = vpop.xlane.xlu0 %125
    %v127 = vsub.f32 %v123, %v126
    %v128 = vmul.f32 %v127, 1.442695
    %v129 = vpow.pop %v128
    %v130 = vsel %vm25, %v129, 0.0
    %131 = vadd.xlane.f32.xlu0 %v130
    %v132 = vpop.xlane.xlu0 %131
    %v133 = vrcp.pop %v132
    %v134 = vmul.f32 %v129, %v133
    %v135 = vlaneseq
    %v136 = vand.u32 %v135, 127
    %vm137 = vcmp.lt.s32.totalorder %v136, 32
    %139 = vset.pattern.permute.xlu0 0
    %140 = vperm.xlu0 %139, %v134
    %v141 = vpop.permute.xlu0 %140
    %143 = vset.pattern.permute.xlu0 1
    %144 = vperm.xlu0 %143, %v134
    %v145 = vpop.permute.xlu0 %144
    %v147 = vsel %vm137, %v141, %v145
    %v148 = vmul.f32 %v33, %v147
    %149 = vst.msk [vmem:[#allocation2] sm:$0xff] %vm42, %v148
    %v150 = vmul.f32 %v141, %v113
    %v151 = vmul.f32 %v145, %v113
    %153 = vrot.lane.b32.xlu0 %v151, 126
    %v154 = vpop.permute.xlu0 %153
    %v156 = vadd.f32 %v150, %v154
    %v157 = vld [vmem:[%s4] sm:$0x1]
    %v159 = vlaneseq
    %v160 = vshrl.u32 %v159, 7
    %v161 = vsub.s32 0, %v160
    %v162 = vrot.slane %v157, %v161
    %163 = vrot.lane.b32.xlu0 %v162, 32
    %v164 = vpop.permute.xlu0 %163
    %v166 = vadd.f32 %v156, %v164
    %168 = vrot.lane.b32.xlu0 %v166, 96
    %v169 = vpop.permute.xlu0 %168
    %vm171 = vcmask 15360
    %172 = vst.msk [vmem:[%s5] sm:$0xff] %vm171, %v169
    // Predicated region
    $region22: #{tpu_custom_call.1} parent=1 // pred_check
      _
    $region23: #{tpu_custom_call.1} parent=1 // pred_check_branch
      %174 = sbr.rel (0) target = $region25
    $region24: #{tpu_custom_call.1} parent=1 // pred_region
      _
    $region25: #{tpu_custom_call.1} parent=1 // pred_fallthru
      _
    // Predicated region
    $region26: #{tpu_custom_call.1} parent=1 // pred_check
      _
    $region27: #{tpu_custom_call.1} parent=1 // pred_check_branch
      %176 = sbr.rel (0) target = $region29
    $region28: #{tpu_custom_call.1} parent=1 // pred_region
      %s178 = ssub.s32 128, 128
      %179 = vsyncadd [#allocation3], %s178
      %s181 = sshll.u32 [#allocation2], 4
      %s182 = int_to_ptr.vmem [resolvable:$true] %s181
      %184 = dma.vmem_to_hbm [thread:$0]  %s182, 128, %s6, [#allocation3]
    $region29: #{tpu_custom_call.1} parent=1 // pred_fallthru
      _
    // Predicated region
    $region30: #{tpu_custom_call.1} parent=1 // pred_check
      _
    $region31: #{tpu_custom_call.1} parent=1 // pred_check_branch
      %186 = sbr.rel (0) target = $region33
    $region32: #{tpu_custom_call.1} parent=1 // pred_region
      _
    $region33: #{tpu_custom_call.1} parent=1 // pred_fallthru
      _
    // Predicated region
    $region34: #{tpu_custom_call.1} parent=1 // pred_check
      _
    $region35: #{tpu_custom_call.1} parent=1 // pred_check_branch
      %188 = sbr.rel (0) target = $region37
    $region36: #{tpu_custom_call.1} parent=1 // pred_region
      %189 = dma.done [#allocation3], 128
    $region37: #{tpu_custom_call.1} parent=1 // pred_fallthru
      _
    %190 = vsyncpa [#allocation3], 1

</llo_original>
